<compile_context>
chip_gen: v5e
topology: v5e:2x2
jax: 0.10.0
libtpu: 0.0.40
codegen_flags: <defaults>
</compile_context>

<pallas_src>
import functools

import jax
import jax.numpy as jnp
from jax.experimental import pallas as pl
from jax.experimental.pallas import tpu as pltpu

_LANES = 128   # channel (sublane) padding for the weight / bias operands


def _round_up(x, m):
    return ((x + m - 1) // m) * m


def _vmem_capacity_bytes():
    """Physical VMEM of the current TPU generation (conservative fallback)."""
    try:
        info = pltpu.get_tpu_info()
        cap = int(getattr(info, "vmem_capacity_bytes", 0) or 0)
        if cap > 0:
            return cap
    except Exception:
        pass
    return 64 * 1024 * 1024          # v7x per-core VMEM — safe everywhere


def _fwd_kernel(patches_ref, w_ref, bias_ref, out_ref, sum_ref, sq_ref, *,
                tile, np_rows, neg_slope, c_out):
    """Fused conv(im2col matmul) + 2x2 max-pool + bias + leaky_relu + BN stats.

    patches_ref: [4, K, tile]   bf16  (quadrant, conv tap, pooled pixel)
    w_ref:       [128, K]       bf16  (padded out-channel, conv tap)
    bias_ref:    [128, 1]       f32
    out_ref:     [C_out, tile]  f32   pooled pre-batch-norm activation
    sum_ref:     [1, 128, 1]    f32   per-tile per-channel sum
    sq_ref:      [1, 128, 1]    f32   per-tile per-channel centered square-sum
    """
    w = w_ref[...]
    # 2x2 max-pool fused with the conv as a per-quadrant max: leaky_relu is
    # monotone (0 <= neg_slope <= 1) and bias is per-channel, so
    # pool(relu(conv + b)) == relu(max_q conv_q + b).
    m0 = jnp.dot(w, patches_ref[0], preferred_element_type=jnp.float32)
    m1 = jnp.dot(w, patches_ref[1], preferred_element_type=jnp.float32)
    m2 = jnp.dot(w, patches_ref[2], preferred_element_type=jnp.float32)
    m3 = jnp.dot(w, patches_ref[3], preferred_element_type=jnp.float32)
    m = jnp.maximum(jnp.maximum(m0, m1), jnp.maximum(m2, m3))   # [128, tile]
    act = m + bias_ref[...]
    act = jnp.maximum(act, neg_slope * act)                     # leaky_relu

    # Lane-dense store of only the real channels (channels are sublanes, the
    # pooled-pixel axis is lanes and tile % 128 == 0 -> unmasked full vst).
    out_ref[...] = act[:c_out, :]

    # Per-tile batch-norm partials over the valid pooled pixels (lane mask for
    # the padded tail of the last tile).  Centered form feeds Chan's combine.
    i = pl.program_id(0)
    cols = i * tile + jax.lax.broadcasted_iota(jnp.int32, (1, tile), 1)
    valid = (cols < np_rows).astype(jnp.float32)                # [1, tile]
    cnt = jnp.minimum(np_rows - i * tile, tile).astype(jnp.float32)
    s = jnp.sum(act * valid, axis=1, keepdims=True)             # [128, 1]
    centered = (act - s / cnt) * valid
    q = jnp.sum(centered * centered, axis=1, keepdims=True)     # [128, 1]
    sum_ref[0] = s
    sq_ref[0] = q


@functools.partial(
    jax.jit,
    static_argnames=("kernel_size", "pool_stride", "neg_slope", "eps",
                     "batch_norm", "row_tile"))
def convnet_forward(x_nchw, w_oihw, bias, gamma, beta, *, kernel_size=3,
                    pool_stride=2, neg_slope=0.01, eps=1e-5, batch_norm=True,
                    row_tile=None):
    """Pallas implementation of ConvNet.forward (training-mode BatchNorm)."""
    N, C_in, H, W = x_nchw.shape
    C_out = w_oihw.shape[0]
    k = kernel_size
    p = k // 2                                   # 'same' padding
    assert pool_stride == 2, "kernel is specialized to 2x2 max-pool"
    assert k % 2 == 1, "'same' padding assumes an odd kernel size"
    assert C_out <= _LANES
    assert 0.0 <= neg_slope <= 1.0, \
        "conv/pool/activation fusion requires monotone leaky_relu"
    Hp, Wp = H // 2, W // 2                      # MaxPool2d floors odd sizes
    assert Hp >= 1 and Wp >= 1
    NP = N * Hp * Wp                             # pooled output pixels
    K = C_in * k * k                             # compact contraction dim

    # ---------- K- and VMEM-aware tile selection (multiple of 128 lanes) ----
    vmem_limit = min(int(_vmem_capacity_bytes() * 0.75), 96 * 1024 * 1024)
    if row_tile is None:
        per_col = 2 * (4 * K * 2 + C_out * 4)    # dbl-buffered patches + out
        fixed = 2 * (_LANES * K * 2) + (1 << 20) # weight blocks + slack
        budget = max(int(vmem_limit * 0.6) - fixed, 1 << 20)
        tile = max(128, min(2048, (budget // per_col) // 128 * 128))
        tile = min(tile, _round_up(NP, 128))
    else:
        assert row_tile > 0 and row_tile % 128 == 0
        tile = row_tile
    num_tiles = -(-NP // tile)
    np_pad = num_tiles * tile

    # ---------- glue: compact bf16 im2col, [quadrant, tap, pooled px] -------
    # (bf16 operands / f32 MXU accumulation is an intentional precision choice)
    xp = jnp.pad(x_nchw.astype(jnp.bfloat16), ((0, 0), (0, 0), (p, p), (p, p)))
    taps = jnp.stack([xp[:, :, dh:dh + H, dw:dw + W]
                      for dh in range(k) for dw in range(k)], axis=2)
    patches = taps.reshape(N, K, H, W)[:, :, :2 * Hp, :2 * Wp]   # crop to even
    patches = patches.reshape(N, K, Hp, 2, Wp, 2)
    patches = patches.transpose(3, 5, 1, 0, 2, 4).reshape(4, K, NP)
    patches = jnp.pad(patches, ((0, 0), (0, 0), (0, np_pad - NP)))

    w_ck = jnp.pad(w_oihw.reshape(C_out, K).astype(jnp.bfloat16),
                   ((0, _LANES - C_out), (0, 0)))                # [128, K]
    bias_col = jnp.pad(bias.astype(jnp.float32),
                       (0, _LANES - C_out)).reshape(_LANES, 1)   # [128, 1]

    pooled_pad, tsum, tsq = pl.pallas_call(
        functools.partial(_fwd_kernel, tile=tile, np_rows=NP,
                          neg_slope=neg_slope, c_out=C_out),
        out_shape=(jax.ShapeDtypeStruct((C_out, np_pad), jnp.float32),
                   jax.ShapeDtypeStruct((num_tiles, _LANES, 1), jnp.float32),
                   jax.ShapeDtypeStruct((num_tiles, _LANES, 1), jnp.float32)),
        grid=(num_tiles,),
        in_specs=[pl.BlockSpec((4, K, tile), lambda i: (0, 0, i)),
                  pl.BlockSpec((_LANES, K), lambda i: (0, 0)),
                  pl.BlockSpec((_LANES, 1), lambda i: (0, 0))],
        out_specs=(pl.BlockSpec((C_out, tile), lambda i: (0, i)),
                   pl.BlockSpec((1, _LANES, 1), lambda i: (i, 0, 0)),
                   pl.BlockSpec((1, _LANES, 1), lambda i: (i, 0, 0))),
        compiler_params=pltpu.CompilerParams(
            dimension_semantics=("parallel",),
            vmem_limit_bytes=vmem_limit),
    )(patches, w_ck, bias_col)

    pooled = pooled_pad[:, :NP]                                  # [C_out, NP]

    if batch_norm:
        # Chan's parallel combine of the per-tile (sum, centered sq-sum).
        s = tsum[:, :C_out, 0]                                   # [T, C_out]
        q = tsq[:, :C_out, 0]
        cnt = jnp.minimum(NP - jnp.arange(num_tiles) * tile,
                          tile).astype(jnp.float32)              # [T]
        mean = jnp.sum(s, axis=0) / NP
        m2 = (jnp.sum(q, axis=0)
              + jnp.sum(cnt[:, None] * (s / cnt[:, None] - mean) ** 2, axis=0))
        var = m2 / NP                                            # biased (train)
        inv_std = jax.lax.rsqrt(var + eps)
        scale = gamma.astype(jnp.float32) * inv_std
        shift = beta.astype(jnp.float32) - mean * scale
        pooled = pooled * scale[:, None] + shift[:, None]        # epilogue affine

    out = pooled.reshape(C_out, N, Hp, Wp)
    return jnp.transpose(out, (1, 0, 2, 3))                      # [N, C, Hp, Wp]


def _reference(x, w, b, gamma, beta, *, kernel_size=3, neg_slope=0.01,
               eps=1e-5, match_bf16=True, batch_norm=True):
    """Pure-JAX reference mirroring the PyTorch forward.

    With match_bf16=True the conv operands are rounded to bf16 exactly like the
    kernel does (accumulation stays f32), isolating structural correctness.
    """
    p = kernel_size // 2
    if match_bf16:
        x = x.astype(jnp.bfloat16).astype(jnp.float32)
        w = w.astype(jnp.bfloat16).astype(jnp.float32)
    conv = jax.lax.conv_general_dilated(
        x, w, window_strides=(1, 1), padding=[(p, p), (p, p)],
        dimension_numbers=("NCHW", "OIHW", "NCHW"))
    conv = conv + b.reshape(1, -1, 1, 1)
    act = jnp.where(conv >= 0, conv, neg_slope * conv)
    pooled = jax.lax.reduce_window(act, -jnp.inf, jax.lax.max,
                                   (1, 1, 2, 2), (1, 1, 2, 2), "VALID")
    if not batch_norm:
        return pooled
    mean = jnp.mean(pooled, axis=(0, 2, 3), keepdims=True)
    var = jnp.mean((pooled - mean) ** 2, axis=(0, 2, 3), keepdims=True)
    return ((pooled - mean) * jax.lax.rsqrt(var + eps)
            * gamma.reshape(1, -1, 1, 1) + beta.reshape(1, -1, 1, 1))


if __name__ == "__main__":
    N, C_in, H, W = 2, 4, 16, 16
    C_out, k = 8, 3

    key = jax.random.PRNGKey(0)
    kx, kw, kb, kx2, kx3 = jax.random.split(key, 5)
    x = jax.random.normal(kx, (N, C_in, H, W), dtype=jnp.float32)
    w = jax.random.normal(kw, (C_out, C_in, k, k), dtype=jnp.float32) * 0.1
    b = jax.random.normal(kb, (C_out,), dtype=jnp.float32) * 0.1
    gamma = jnp.ones((C_out,), jnp.float32)   # BatchNorm2d default weight
    beta = jnp.zeros((C_out,), jnp.float32)   # BatchNorm2d default bias

    out = jax.block_until_ready(
        convnet_forward(x, w, b, gamma, beta, kernel_size=k))
    assert out.shape == (N, C_out, H // 2, W // 2)
    ref_bf16 = _reference(x, w, b, gamma, beta, kernel_size=k, match_bf16=True)
    ref_f32 = _reference(x, w, b, gamma, beta, kernel_size=k, match_bf16=False)
    assert float(jnp.max(jnp.abs(out - ref_bf16))) < 1e-3, \
        "mismatch vs bf16-consistent reference"
    assert float(jnp.max(jnp.abs(out - ref_f32))) < 5e-2, \
        "mismatch vs full-f32 reference"

    # Odd spatial size (MaxPool floor) + pooled-pixel count below the tile:
    # exercises the even-crop and masked-statistics paths.
    x2 = jax.random.normal(kx2, (3, C_in, 13, 13), dtype=jnp.float32)
    out2 = jax.block_until_ready(
        convnet_forward(x2, w, b, gamma, beta, kernel_size=k))
    ref2 = _reference(x2, w, b, gamma, beta, kernel_size=k, match_bf16=True)
    assert out2.shape == (3, C_out, 6, 6)
    assert float(jnp.max(jnp.abs(out2 - ref2))) < 1e-3, \
        "mismatch vs reference (odd size / masked tile case)"

    # batch_norm=False path of the module.
    out2n = jax.block_until_ready(
        convnet_forward(x2, w, b, gamma, beta, kernel_size=k, batch_norm=False))
    ref2n = _reference(x2, w, b, gamma, beta, kernel_size=k,
                       match_bf16=True, batch_norm=False)
    assert float(jnp.max(jnp.abs(out2n - ref2n))) < 1e-3, \
        "mismatch vs reference (batch_norm=False)"

    # Multi-tile grid (row_tile=128 -> 4 parallel tiles): exercises the grid
    # pipeline and the Chan cross-tile variance combine.
    x3 = jax.random.normal(kx3, (2, C_in, 32, 32), dtype=jnp.float32)
    out3 = jax.block_until_ready(
        convnet_forward(x3, w, b, gamma, beta, kernel_size=k, row_tile=128))
    ref3 = _reference(x3, w, b, gamma, beta, kernel_size=k, match_bf16=True)
    assert out3.shape == (2, C_out, 16, 16)
    assert float(jnp.max(jnp.abs(out3 - ref3))) < 1e-3, \
        "mismatch vs reference (multi-tile case)"

    print("KERNEL_OK")
</pallas_src>

<mosaic_0001>
module attributes {stable_mosaic.version = 11 : i64} {
  func.func @_fwd_kernel(%arg0: i32, %arg1: memref<4x36x128xbf16, #tpu.memory_space<vmem>>, %arg2: memref<128x36xbf16, #tpu.memory_space<vmem>>, %arg3: memref<128x1xf32, #tpu.memory_space<vmem>>, %arg4: memref<8x128xf32, #tpu.memory_space<vmem>>, %arg5: memref<1x128x1xf32, #tpu.memory_space<vmem>>, %arg6: memref<1x128x1xf32, #tpu.memory_space<vmem>>) attributes {dimension_semantics = [#tpu.dimension_semantics<parallel>], iteration_bounds = array<i64: 1>, scalar_prefetch = 0 : i64, scratch_operands = 0 : i64, tpu.core_type = #tpu.core_type<tc>, window_params = [{transform_indices = @transform_0, window_bounds = array<i64: 4, 36, 128>}, {pipeline_mode = #tpu.pipeline_mode<synchronous>, transform_indices = @transform_1, window_bounds = array<i64: 128, 36>}, {pipeline_mode = #tpu.pipeline_mode<synchronous>, transform_indices = @transform_2, window_bounds = array<i64: 128, 1>}, {transform_indices = @transform_3, window_bounds = array<i64: 8, 128>}, {transform_indices = @transform_4, window_bounds = array<i64: 1, 128, 1>}, {transform_indices = @transform_5, window_bounds = array<i64: 1, 128, 1>}]} {
    %c0 = arith.constant 0 : index
    %c0_0 = arith.constant 0 : index
    %0 = vector.load %arg2[%c0, %c0_0] : memref<128x36xbf16, #tpu.memory_space<vmem>>, vector<128x36xbf16>
    %c0_1 = arith.constant 0 : index
    %c0_2 = arith.constant 0 : index
    %c0_3 = arith.constant 0 : index
    %1 = vector.load %arg1[%c0_1, %c0_2, %c0_3] : memref<4x36x128xbf16, #tpu.memory_space<vmem>>, vector<1x36x128xbf16>
    %2 = vector.shape_cast %1 : vector<1x36x128xbf16> to vector<36x128xbf16>
    %cst = arith.constant dense<0.000000e+00> : vector<128x128xf32>
    %3 = tpu.matmul %0, %2, %cst {dimension_numbers = #tpu.dot_dimension_numbers<[1], [0], [0], [1], [0, 0, 1, 1], [], []>} : vector<128x36xbf16>, vector<36x128xbf16>, vector<128x128xf32> -> vector<128x128xf32>
    %c1 = arith.constant 1 : index
    %c0_4 = arith.constant 0 : index
    %c0_5 = arith.constant 0 : index
    %4 = vector.load %arg1[%c1, %c0_4, %c0_5] : memref<4x36x128xbf16, #tpu.memory_space<vmem>>, vector<1x36x128xbf16>
    %5 = vector.shape_cast %4 : vector<1x36x128xbf16> to vector<36x128xbf16>
    %cst_6 = arith.constant dense<0.000000e+00> : vector<128x128xf32>
    %6 = tpu.matmul %0, %5, %cst_6 {dimension_numbers = #tpu.dot_dimension_numbers<[1], [0], [0], [1], [0, 0, 1, 1], [], []>} : vector<128x36xbf16>, vector<36x128xbf16>, vector<128x128xf32> -> vector<128x128xf32>
    %c2 = arith.constant 2 : index
    %c0_7 = arith.constant 0 : index
    %c0_8 = arith.constant 0 : index
    %7 = vector.load %arg1[%c2, %c0_7, %c0_8] : memref<4x36x128xbf16, #tpu.memory_space<vmem>>, vector<1x36x128xbf16>
    %8 = vector.shape_cast %7 : vector<1x36x128xbf16> to vector<36x128xbf16>
    %cst_9 = arith.constant dense<0.000000e+00> : vector<128x128xf32>
    %9 = tpu.matmul %0, %8, %cst_9 {dimension_numbers = #tpu.dot_dimension_numbers<[1], [0], [0], [1], [0, 0, 1, 1], [], []>} : vector<128x36xbf16>, vector<36x128xbf16>, vector<128x128xf32> -> vector<128x128xf32>
    %c3 = arith.constant 3 : index
    %c0_10 = arith.constant 0 : index
    %c0_11 = arith.constant 0 : index
    %10 = vector.load %arg1[%c3, %c0_10, %c0_11] : memref<4x36x128xbf16, #tpu.memory_space<vmem>>, vector<1x36x128xbf16>
    %11 = vector.shape_cast %10 : vector<1x36x128xbf16> to vector<36x128xbf16>
    %cst_12 = arith.constant dense<0.000000e+00> : vector<128x128xf32>
    %12 = tpu.matmul %0, %11, %cst_12 {dimension_numbers = #tpu.dot_dimension_numbers<[1], [0], [0], [1], [0, 0, 1, 1], [], []>} : vector<128x36xbf16>, vector<36x128xbf16>, vector<128x128xf32> -> vector<128x128xf32>
    %13 = arith.maximumf %3, %6 : vector<128x128xf32>
    %14 = arith.maximumf %9, %12 : vector<128x128xf32>
    %15 = arith.maximumf %13, %14 : vector<128x128xf32>
    %c0_13 = arith.constant 0 : index
    %c0_14 = arith.constant 0 : index
    %16 = vector.load %arg3[%c0_13, %c0_14] : memref<128x1xf32, #tpu.memory_space<vmem>>, vector<128x1xf32>
    %17 = vector.broadcast %16 : vector<128x1xf32> to vector<128x128xf32>
    %18 = arith.addf %15, %17 : vector<128x128xf32>
    %cst_15 = arith.constant 0.00999999977 : f32
    %19 = vector.broadcast %cst_15 : f32 to vector<128x128xf32>
    %20 = arith.mulf %19, %18 : vector<128x128xf32>
    %21 = arith.maximumf %18, %20 : vector<128x128xf32>
    %22 = vector.extract_strided_slice %21 {offsets = [0, 0], sizes = [8, 128], strides = [1, 1]} : vector<128x128xf32> to vector<8x128xf32>
    %c0_16 = arith.constant 0 : index
    %c0_17 = arith.constant 0 : index
    %23 = vector.load %arg4[%c0_16, %c0_17] : memref<8x128xf32, #tpu.memory_space<vmem>>, vector<8x128xf32>
    tpu.vector_store %arg4[%c0_16, %c0_17], %22 {strides = array<i32>} : memref<8x128xf32, #tpu.memory_space<vmem>>, vector<8x128xf32>,
    %c128_i32 = arith.constant 128 : i32
    %24 = arith.muli %arg0, %c128_i32 : i32
    %25 = tpu.iota {dimensions = array<i32: 1>} : vector<1x128xi32>
    %26 = vector.broadcast %24 : i32 to vector<1x128xi32>
    %27 = arith.addi %26, %25 : vector<1x128xi32>
    %c128_i32_18 = arith.constant 128 : i32
    %28 = vector.broadcast %c128_i32_18 : i32 to vector<1x128xi32>
    %29 = arith.cmpi slt, %27, %28 : vector<1x128xi32>
    %30 = arith.extui %29 : vector<1x128xi1> to vector<1x128xi32>
    %31 = arith.sitofp %30 : vector<1x128xi32> to vector<1x128xf32>
    %c128_i32_19 = arith.constant 128 : i32
    %32 = arith.muli %arg0, %c128_i32_19 : i32
    %c128_i32_20 = arith.constant 128 : i32
    %33 = arith.subi %c128_i32_20, %32 : i32
    %c128_i32_21 = arith.constant 128 : i32
    %34 = arith.minsi %33, %c128_i32_21 : i32
    %35 = arith.sitofp %34 : i32 to f32
    %36 = vector.broadcast %31 : vector<1x128xf32> to vector<128x128xf32>
    %37 = arith.mulf %21, %36 : vector<128x128xf32>
    %cst_22 = arith.constant dense<0.000000e+00> : vector<128xf32>
    %38 = vector.multi_reduction <add>, %37, %cst_22 [1] : vector<128x128xf32> to vector<128xf32>
    %39 = vector.shape_cast %38 : vector<128xf32> to vector<128x1xf32>
    %40 = vector.broadcast %35 : f32 to vector<128x1xf32>
    %41 = arith.divf %39, %40 : vector<128x1xf32>
    %42 = vector.broadcast %41 : vector<128x1xf32> to vector<128x128xf32>
    %43 = arith.subf %21, %42 : vector<128x128xf32>
    %44 = vector.broadcast %31 : vector<1x128xf32> to vector<128x128xf32>
    %45 = arith.mulf %43, %44 : vector<128x128xf32>
    %46 = arith.mulf %45, %45 : vector<128x128xf32>
    %cst_23 = arith.constant dense<0.000000e+00> : vector<128xf32>
    %47 = vector.multi_reduction <add>, %46, %cst_23 [1] : vector<128x128xf32> to vector<128xf32>
    %48 = vector.shape_cast %47 : vector<128xf32> to vector<128x1xf32>
    %c0_24 = arith.constant 0 : index
    %c0_25 = arith.constant 0 : index
    %c0_26 = arith.constant 0 : index
    %49 = vector.load %arg5[%c0_24, %c0_25, %c0_26] : memref<1x128x1xf32, #tpu.memory_space<vmem>>, vector<1x128x1xf32>
    %50 = vector.shape_cast %49 : vector<1x128x1xf32> to vector<128x1xf32>
    %51 = vector.shape_cast %39 : vector<128x1xf32> to vector<1x128x1xf32>
    tpu.vector_store %arg5[%c0_24, %c0_25, %c0_26], %51 {strides = array<i32>} : memref<1x128x1xf32, #tpu.memory_space<vmem>>, vector<1x128x1xf32>,
    %c0_27 = arith.constant 0 : index
    %c0_28 = arith.constant 0 : index
    %c0_29 = arith.constant 0 : index
    %52 = vector.load %arg6[%c0_27, %c0_28, %c0_29] : memref<1x128x1xf32, #tpu.memory_space<vmem>>, vector<1x128x1xf32>
    %53 = vector.shape_cast %52 : vector<1x128x1xf32> to vector<128x1xf32>
    %54 = vector.shape_cast %48 : vector<128x1xf32> to vector<1x128x1xf32>
    tpu.vector_store %arg6[%c0_27, %c0_28, %c0_29], %54 {strides = array<i32>} : memref<1x128x1xf32, #tpu.memory_space<vmem>>, vector<1x128x1xf32>,
    return
  }
  func.func @transform_0(%arg0: i32) -> (i32, i32, i32) {
    %c0_i32 = arith.constant 0 : i32
    %c0_i32_0 = arith.constant 0 : i32
    %c0_i32_1 = arith.constant 0 : i32
    return %c0_i32, %c0_i32_0, %arg0 : i32, i32, i32
  }
  func.func @transform_1(%arg0: i32) -> (i32, i32) {
    %c0_i32 = arith.constant 0 : i32
    %c0_i32_0 = arith.constant 0 : i32
    %c0_i32_1 = arith.constant 0 : i32
    return %c0_i32, %c0_i32_0 : i32, i32
  }
  func.func @transform_2(%arg0: i32) -> (i32, i32) {
    %c0_i32 = arith.constant 0 : i32
    %c0_i32_0 = arith.constant 0 : i32
    %c0_i32_1 = arith.constant 0 : i32
    return %c0_i32, %c0_i32_0 : i32, i32
  }
  func.func @transform_3(%arg0: i32) -> (i32, i32) {
    %c0_i32 = arith.constant 0 : i32
    %c0_i32_0 = arith.constant 0 : i32
    return %c0_i32, %arg0 : i32, i32
  }
  func.func @transform_4(%arg0: i32) -> (i32, i32, i32) {
    %c0_i32 = arith.constant 0 : i32
    %c0_i32_0 = arith.constant 0 : i32
    %c0_i32_1 = arith.constant 0 : i32
    return %arg0, %c0_i32, %c0_i32_0 : i32, i32, i32
  }
  func.func @transform_5(%arg0: i32) -> (i32, i32, i32) {
    %c0_i32 = arith.constant 0 : i32
    %c0_i32_0 = arith.constant 0 : i32
    %c0_i32_1 = arith.constant 0 : i32
    return %arg0, %c0_i32, %c0_i32_0 : i32, i32, i32
  }
}

</mosaic_0001>

<llo_original>
// kernel: convnet_forward.1
$region0: #{convnet_forward.1}
  #allocation0 [shape = 'u32[]', space=smem, size = 0x4, offset = 0x4, fixed_abs, tag = 'smem constant byte address 0x4 - core index']
  #allocation1 [shape = 'u32[72,128]{1,0:T(1,128)}', space=vmem, size = 0x9000, scoped, tag = 'internal scratch']
  %s0 = inlined_call_operand.vmem [shape: bf16[4,36,128], index: 0, kind: input, shape index: {}]
  %s1 = inlined_call_operand.vmem [shape: bf16[128,36], index: 1, kind: input, shape index: {}]
  %s2 = inlined_call_operand.vmem [shape: f32[128,1], index: 2, kind: input, shape index: {}]
  %s3 = inlined_call_operand.vmem [shape: f32[8,128], index: 3, kind: output, shape index: {0}]
  %s4 = inlined_call_operand.vmem [shape: f32[1,128,1], index: 4, kind: output, shape index: {1}]
  %s5 = inlined_call_operand.vmem [shape: f32[1,128,1], index: 5, kind: output, shape index: {2}]
  %6 = xla_tuple %s3, %s4, %s5
  %s7 = sld [smem:[#allocation0]]
  $region38: #{convnet_forward.1} parent=0
    _
  %s9 = ssub.s32 1, %s7
  %s10 = scalar_select 0, %s9, %s7
  // Predicated region
  $region2: #{convnet_forward.1} parent=0 // pred_check
    _
  $region3: #{convnet_forward.1} parent=0 // pred_check_branch
    %12 = sbr.rel (0) target = $region5
  $region4: #{convnet_forward.1} parent=0 // pred_region
    _
  $region5: #{convnet_forward.1} parent=0 // pred_fallthru
    _
  // Predicated region
  $region6: #{convnet_forward.1} parent=0 // pred_check
    _
  $region7: #{convnet_forward.1} parent=0 // pred_check_branch
    %14 = sbr.rel (0) target = $region9
  $region8: #{convnet_forward.1} parent=0 // pred_region
    _
  $region9: #{convnet_forward.1} parent=0 // pred_fallthru
    _
  // Predicated region
  $region10: #{convnet_forward.1} parent=0 // pred_check
    _
  $region11: #{convnet_forward.1} parent=0 // pred_check_branch
    %16 = sbr.rel (0) target = $region13
  $region12: #{convnet_forward.1} parent=0 // pred_region
    _
  $region13: #{convnet_forward.1} parent=0 // pred_fallthru
    _
  %v18 = vld [vmem:[%s1] sm:$0xf]
  %v19 = vld [vmem:[%s1 + $0x4] sm:$0xf]
  %v20 = vld [vmem:[%s1 + $0x8] sm:$0xf]
  %v21 = vld [vmem:[%s1 + $0xc] sm:$0xf]
  %v22 = vld [vmem:[%s1 + $0x10] sm:$0xf]
  %v23 = vld [vmem:[%s1 + $0x14] sm:$0xf]
  %v24 = vld [vmem:[%s1 + $0x18] sm:$0xf]
  %v25 = vld [vmem:[%s1 + $0x1c] sm:$0xf]
  %v26 = vld [vmem:[%s1 + $0x20] sm:$0xf]
  %v27 = vld [vmem:[%s1 + $0x24] sm:$0xf]
  %v28 = vld [vmem:[%s1 + $0x28] sm:$0xf]
  %v29 = vld [vmem:[%s1 + $0x2c] sm:$0xf]
  %v30 = vld [vmem:[%s1 + $0x30] sm:$0xf]
  %v31 = vld [vmem:[%s1 + $0x34] sm:$0xf]
  %v32 = vld [vmem:[%s1 + $0x38] sm:$0xf]
  %v33 = vld [vmem:[%s1 + $0x3c] sm:$0xf]
  %v34 = vld [vmem:[%s0] sm:$0xf]
  %v35 = vld [vmem:[%s0 + $0x4] sm:$0xf]
  %v36 = vld [vmem:[%s0 + $0x8] sm:$0xf]
  %v37 = vld [vmem:[%s0 + $0xc] sm:$0xf]
  %v38 = vld [vmem:[%s0 + $0x10] sm:$0x3]
  %v55 = vunpack.c.l.b16 %v18
  %v56 = vunpack.c.l.b16 %v19
  %v57 = vunpack.c.l.b16 %v20
  %v58 = vunpack.c.l.b16 %v21
  %v59 = vunpack.c.l.b16 %v22
  %v60 = vunpack.c.l.b16 %v23
  %v61 = vunpack.c.l.b16 %v24
  %v62 = vunpack.c.l.b16 %v25
  %v63 = vunpack.c.l.b16 %v26
  %v64 = vunpack.c.l.b16 %v27
  %v65 = vunpack.c.l.b16 %v28
  %v66 = vunpack.c.l.b16 %v29
  %v67 = vunpack.c.l.b16 %v30
  %v68 = vunpack.c.l.b16 %v31
  %v69 = vunpack.c.l.b16 %v32
  %v70 = vunpack.c.l.b16 %v33
  %v71 = vpack.c.b16 %v56, %v55
  %v72 = vpack.c.b16 %v58, %v57
  %v73 = vpack.c.b16 %v60, %v59
  %v74 = vpack.c.b16 %v62, %v61
  %v75 = vpack.c.b16 %v64, %v63
  %v76 = vpack.c.b16 %v66, %v65
  %v77 = vpack.c.b16 %v68, %v67
  %v78 = vpack.c.b16 %v70, %v69
  %v84 = vunpack.c.l.b16 %v34
  %v85 = vunpack.c.l.b16 %v35
  %v86 = vunpack.c.l.b16 %v36
  %v87 = vunpack.c.l.b16 %v37
  %v88 = vunpack.c.l.b16 %v38
  %v89 = vpack.c.b16 %v85, %v84
  %v90 = vpack.c.b16 %v87, %v86
  %v91 = vpack.c.b16 %v88, %v88
  %vm94 = vcmask 293888
  %v96 = vsel %vm94, %v71, 0
  %v99 = vsel %vm94, %v72, 0
  %v102 = vsel %vm94, %v73, 0
  %v105 = vsel %vm94, %v74, 0
  %v108 = vsel %vm94, %v75, 0
  %v111 = vsel %vm94, %v76, 0
  %v114 = vsel %vm94, %v77, 0
  %v117 = vsel %vm94, %v78, 0
  %vm119 = vcmask 1041408
  %v121 = vsel %vm119, %v91, 0
  %123 = vmatpush.bf16.msra.mxu0 0
  %124 = vmatpush.bf16.msra.mxu0 0
  %125 = vmatpush.bf16.msra.mxu0 0
  %126 = vmatpush.bf16.msra.mxu0 0
  %127 = vmatpush.bf16.msra.mxu0 0
  %128 = vmatpush.bf16.msra.mxu0 %v121
  %129 = vmatpush.bf16.msra.mxu0 %v90
  %130 = vmatpush.bf16.msra.mxu0 %v89
  %131 = vmatmul.bf16.gmra.mxu0 %v96
  %v132 = vpop.f32.mrf.mxu0
  %v133 = vadd.f32 0.0, %v132
  %v134 = vpop.f32.mrf.mxu0
  %v135 = vadd.f32 0.0, %v134
  %136 = vmatmul.bf16.gmra.mxu0 %v99
  %v137 = vpop.f32.mrf.mxu0
  %v138 = vadd.f32 0.0, %v137
  %v139 = vpop.f32.mrf.mxu0
  %v140 = vadd.f32 0.0, %v139
  %141 = vmatmul.bf16.gmra.mxu0 %v102
  %v142 = vpop.f32.mrf.mxu0
  %v143 = vadd.f32 0.0, %v142
  %v144 = vpop.f32.mrf.mxu0
  %v145 = vadd.f32 0.0, %v144
  %146 = vmatmul.bf16.gmra.mxu0 %v105
  %v147 = vpop.f32.mrf.mxu0
  %v148 = vadd.f32 0.0, %v147
  %v149 = vpop.f32.mrf.mxu0
  %v150 = vadd.f32 0.0, %v149
  %151 = vmatmul.bf16.gmra.mxu0 %v108
  %v152 = vpop.f32.mrf.mxu0
  %v153 = vadd.f32 0.0, %v152
  %v154 = vpop.f32.mrf.mxu0
  %v155 = vadd.f32 0.0, %v154
  %156 = vmatmul.bf16.gmra.mxu0 %v111
  %v157 = vpop.f32.mrf.mxu0
  %v158 = vadd.f32 0.0, %v157
  %v159 = vpop.f32.mrf.mxu0
  %v160 = vadd.f32 0.0, %v159
  %161 = vmatmul.bf16.gmra.mxu0 %v114
  %v162 = vpop.f32.mrf.mxu0
  %v163 = vadd.f32 0.0, %v162
  %v164 = vpop.f32.mrf.mxu0
  %v165 = vadd.f32 0.0, %v164
  %166 = vmatmul.bf16.gmra.mxu0 %v117
  %v167 = vpop.f32.mrf.mxu0
  %v168 = vadd.f32 0.0, %v167
  %v169 = vpop.f32.mrf.mxu0
  %v170 = vadd.f32 0.0, %v169
  %171 = vdwg.mxu0
  %s172 = scalar_lea.vmem %s0, 20
  %v173 = vld [vmem:[%s172] sm:$0xf]
  %v174 = vld [vmem:[%s172 + $0x4] sm:$0xf]
  %v175 = vld [vmem:[%s172 + $0x8] sm:$0xf]
  %v176 = vld [vmem:[%s172 + $0xc] sm:$0xf]
  %v177 = vld [vmem:[%s172 + $0x10] sm:$0x3]
  %v183 = vunpack.c.l.b16 %v173
  %v184 = vunpack.c.l.b16 %v174
  %v185 = vunpack.c.l.b16 %v175
  %v186 = vunpack.c.l.b16 %v176
  %v187 = vunpack.c.l.b16 %v177
  %v188 = vpack.c.b16 %v184, %v183
  %v189 = vpack.c.b16 %v186, %v185
  %v190 = vpack.c.b16 %v187, %v187
  %v194 = vsel %vm119, %v190, 0
  %196 = vmatpush.bf16.msra.mxu0 0
  %197 = vmatpush.bf16.msra.mxu0 0
  %198 = vmatpush.bf16.msra.mxu0 0
  %199 = vmatpush.bf16.msra.mxu0 0
  %200 = vmatpush.bf16.msra.mxu0 0
  %201 = vmatpush.bf16.msra.mxu0 %v194
  %202 = vmatpush.bf16.msra.mxu0 %v189
  %203 = vmatpush.bf16.msra.mxu0 %v188
  %204 = vmatmul.bf16.gmra.mxu0 %v96
  %v205 = vpop.f32.mrf.mxu0
  %v206 = vadd.f32 0.0, %v205
  %v207 = vpop.f32.mrf.mxu0
  %v208 = vadd.f32 0.0, %v207
  %209 = vmatmul.bf16.gmra.mxu0 %v99
  %v210 = vpop.f32.mrf.mxu0
  %v211 = vadd.f32 0.0, %v210
  %v212 = vpop.f32.mrf.mxu0
  %v213 = vadd.f32 0.0, %v212
  %214 = vmatmul.bf16.gmra.mxu0 %v102
  %v215 = vpop.f32.mrf.mxu0
  %v216 = vadd.f32 0.0, %v215
  %v217 = vpop.f32.mrf.mxu0
  %v218 = vadd.f32 0.0, %v217
  %219 = vmatmul.bf16.gmra.mxu0 %v105
  %v220 = vpop.f32.mrf.mxu0
  %v221 = vadd.f32 0.0, %v220
  %v222 = vpop.f32.mrf.mxu0
  %v223 = vadd.f32 0.0, %v222
  %224 = vmatmul.bf16.gmra.mxu0 %v108
  %v225 = vpop.f32.mrf.mxu0
  %v226 = vadd.f32 0.0, %v225
  %v227 = vpop.f32.mrf.mxu0
  %v228 = vadd.f32 0.0, %v227
  %229 = vmatmul.bf16.gmra.mxu0 %v111
  %v230 = vpop.f32.mrf.mxu0
  %v231 = vadd.f32 0.0, %v230
  %v232 = vpop.f32.mrf.mxu0
  %v233 = vadd.f32 0.0, %v232
  %234 = vmatmul.bf16.gmra.mxu0 %v114
  %v235 = vpop.f32.mrf.mxu0
  %v236 = vadd.f32 0.0, %v235
  %v237 = vpop.f32.mrf.mxu0
  %v238 = vadd.f32 0.0, %v237
  %239 = vmatmul.bf16.gmra.mxu0 %v117
  %v240 = vpop.f32.mrf.mxu0
  %v241 = vadd.f32 0.0, %v240
  %v242 = vpop.f32.mrf.mxu0
  %v243 = vadd.f32 0.0, %v242
  %244 = vdwg.mxu0
  %s245 = scalar_lea.vmem %s0, 40
  %v246 = vld [vmem:[%s245] sm:$0xf]
  %v247 = vld [vmem:[%s245 + $0x4] sm:$0xf]
  %v248 = vld [vmem:[%s245 + $0x8] sm:$0xf]
  %v249 = vld [vmem:[%s245 + $0xc] sm:$0xf]
  %v250 = vld [vmem:[%s245 + $0x10] sm:$0x3]
  %v256 = vunpack.c.l.b16 %v246
  %v257 = vunpack.c.l.b16 %v247
  %v258 = vunpack.c.l.b16 %v248
  %v259 = vunpack.c.l.b16 %v249
  %v260 = vunpack.c.l.b16 %v250
  %v261 = vpack.c.b16 %v257, %v256
  %v262 = vpack.c.b16 %v259, %v258
  %v263 = vpack.c.b16 %v260, %v260
  %v267 = vsel %vm119, %v263, 0
  %269 = vmatpush.bf16.msra.mxu0 0
  %270 = vmatpush.bf16.msra.mxu0 0
  %271 = vmatpush.bf16.msra.mxu0 0
  %272 = vmatpush.bf16.msra.mxu0 0
  %273 = vmatpush.bf16.msra.mxu0 0
  %274 = vmatpush.bf16.msra.mxu0 %v267
  %275 = vmatpush.bf16.msra.mxu0 %v262
  %276 = vmatpush.bf16.msra.mxu0 %v261
  %277 = vmatmul.bf16.gmra.mxu0 %v96
  %v278 = vpop.f32.mrf.mxu0
  %v279 = vadd.f32 0.0, %v278
  %v280 = vpop.f32.mrf.mxu0
  %v281 = vadd.f32 0.0, %v280
  %282 = vmatmul.bf16.gmra.mxu0 %v99
  %v283 = vpop.f32.mrf.mxu0
  %v284 = vadd.f32 0.0, %v283
  %v285 = vpop.f32.mrf.mxu0
  %v286 = vadd.f32 0.0, %v285
  %287 = vmatmul.bf16.gmra.mxu0 %v102
  %v288 = vpop.f32.mrf.mxu0
  %v289 = vadd.f32 0.0, %v288
  %v290 = vpop.f32.mrf.mxu0
  %v291 = vadd.f32 0.0, %v290
  %292 = vmatmul.bf16.gmra.mxu0 %v105
  %v293 = vpop.f32.mrf.mxu0
  %v294 = vadd.f32 0.0, %v293
  %v295 = vpop.f32.mrf.mxu0
  %v296 = vadd.f32 0.0, %v295
  %297 = vmatmul.bf16.gmra.mxu0 %v108
  %v298 = vpop.f32.mrf.mxu0
  %v299 = vadd.f32 0.0, %v298
  %v300 = vpop.f32.mrf.mxu0
  %v301 = vadd.f32 0.0, %v300
  %302 = vmatmul.bf16.gmra.mxu0 %v111
  %v303 = vpop.f32.mrf.mxu0
  %v304 = vadd.f32 0.0, %v303
  %v305 = vpop.f32.mrf.mxu0
  %v306 = vadd.f32 0.0, %v305
  %307 = vmatmul.bf16.gmra.mxu0 %v114
  %v308 = vpop.f32.mrf.mxu0
  %v309 = vadd.f32 0.0, %v308
  %v310 = vpop.f32.mrf.mxu0
  %v311 = vadd.f32 0.0, %v310
  %312 = vmatmul.bf16.gmra.mxu0 %v117
  %v313 = vpop.f32.mrf.mxu0
  %v314 = vadd.f32 0.0, %v313
  %v315 = vpop.f32.mrf.mxu0
  %v316 = vadd.f32 0.0, %v315
  %317 = vdwg.mxu0
  %s318 = scalar_lea.vmem %s0, 60
  %v319 = vld [vmem:[%s318] sm:$0xf]
  %v320 = vld [vmem:[%s318 + $0x4] sm:$0xf]
  %v321 = vld [vmem:[%s318 + $0x8] sm:$0xf]
  %v322 = vld [vmem:[%s318 + $0xc] sm:$0xf]
  %v323 = vld [vmem:[%s318 + $0x10] sm:$0x3]
  %v329 = vunpack.c.l.b16 %v319
  %v330 = vunpack.c.l.b16 %v320
  %v331 = vunpack.c.l.b16 %v321
  %v332 = vunpack.c.l.b16 %v322
  %v333 = vunpack.c.l.b16 %v323
  %v334 = vpack.c.b16 %v330, %v329
  %v335 = vpack.c.b16 %v332, %v331
  %v336 = vpack.c.b16 %v333, %v333
  %v340 = vsel %vm119, %v336, 0
  %342 = vmatpush.bf16.msra.mxu0 0
  %343 = vmatpush.bf16.msra.mxu0 0
  %344 = vmatpush.bf16.msra.mxu0 0
  %345 = vmatpush.bf16.msra.mxu0 0
  %346 = vmatpush.bf16.msra.mxu0 0
  %347 = vmatpush.bf16.msra.mxu0 %v340
  %348 = vmatpush.bf16.msra.mxu0 %v335
  %349 = vmatpush.bf16.msra.mxu0 %v334
  %350 = vmatmul.bf16.gmra.mxu0 %v96
  %v351 = vpop.f32.mrf.mxu0
  %v352 = vadd.f32 0.0, %v351
  %v353 = vpop.f32.mrf.mxu0
  %v354 = vadd.f32 0.0, %v353
  %355 = vmatmul.bf16.gmra.mxu0 %v99
  %v356 = vpop.f32.mrf.mxu0
  %v357 = vadd.f32 0.0, %v356
  %v358 = vpop.f32.mrf.mxu0
  %v359 = vadd.f32 0.0, %v358
  %360 = vmatmul.bf16.gmra.mxu0 %v102
  %v361 = vpop.f32.mrf.mxu0
  %v362 = vadd.f32 0.0, %v361
  %v363 = vpop.f32.mrf.mxu0
  %v364 = vadd.f32 0.0, %v363
  %365 = vmatmul.bf16.gmra.mxu0 %v105
  %v366 = vpop.f32.mrf.mxu0
  %v367 = vadd.f32 0.0, %v366
  %v368 = vpop.f32.mrf.mxu0
  %v369 = vadd.f32 0.0, %v368
  %370 = vmatmul.bf16.gmra.mxu0 %v108
  %v371 = vpop.f32.mrf.mxu0
  %v372 = vadd.f32 0.0, %v371
  %v373 = vpop.f32.mrf.mxu0
  %v374 = vadd.f32 0.0, %v373
  %375 = vmatmul.bf16.gmra.mxu0 %v111
  %v376 = vpop.f32.mrf.mxu0
  %v377 = vadd.f32 0.0, %v376
  %v378 = vpop.f32.mrf.mxu0
  %v379 = vadd.f32 0.0, %v378
  %380 = vmatmul.bf16.gmra.mxu0 %v114
  %v381 = vpop.f32.mrf.mxu0
  %v382 = vadd.f32 0.0, %v381
  %v383 = vpop.f32.mrf.mxu0
  %v384 = vadd.f32 0.0, %v383
  %385 = vmatmul.bf16.gmra.mxu0 %v117
  %v386 = vpop.f32.mrf.mxu0
  %v387 = vadd.f32 0.0, %v386
  %v388 = vpop.f32.mrf.mxu0
  %v389 = vadd.f32 0.0, %v388
  %390 = vdwg.mxu0
  %v391 = vmax.f32 %v133, %v206
  %v392 = vmax.f32 %v135, %v208
  %v393 = vmax.f32 %v138, %v211
  %v394 = vmax.f32 %v140, %v213
  %v395 = vmax.f32 %v143, %v216
  %v396 = vmax.f32 %v145, %v218
  %v397 = vmax.f32 %v148, %v221
  %v398 = vmax.f32 %v150, %v223
  %v399 = vmax.f32 %v153, %v226
  %v400 = vmax.f32 %v155, %v228
  %v401 = vmax.f32 %v158, %v231
  %v402 = vmax.f32 %v160, %v233
  %v403 = vmax.f32 %v163, %v236
  %v404 = vmax.f32 %v165, %v238
  %v405 = vmax.f32 %v168, %v241
  %v406 = vmax.f32 %v170, %v243
  %v407 = vmax.f32 %v279, %v352
  %v408 = vmax.f32 %v281, %v354
  %v409 = vmax.f32 %v284, %v357
  %v410 = vmax.f32 %v286, %v359
  %v411 = vmax.f32 %v289, %v362
  %v412 = vmax.f32 %v291, %v364
  %v413 = vmax.f32 %v294, %v367
  %v414 = vmax.f32 %v296, %v369
  %v415 = vmax.f32 %v299, %v372
  %v416 = vmax.f32 %v301, %v374
  %v417 = vmax.f32 %v304, %v377
  %v418 = vmax.f32 %v306, %v379
  %v419 = vmax.f32 %v309, %v382
  %v420 = vmax.f32 %v311, %v384
  %v421 = vmax.f32 %v314, %v387
  %v422 = vmax.f32 %v316, %v389
  %v423 = vmax.f32 %v391, %v407
  %v424 = vmax.f32 %v392, %v408
  %v425 = vmax.f32 %v393, %v409
  %v426 = vmax.f32 %v394, %v410
  %v427 = vmax.f32 %v395, %v411
  %v428 = vmax.f32 %v396, %v412
  %v429 = vmax.f32 %v397, %v413
  %v430 = vmax.f32 %v398, %v414
  %v431 = vmax.f32 %v399, %v415
  %v432 = vmax.f32 %v400, %v416
  %v433 = vmax.f32 %v401, %v417
  %v434 = vmax.f32 %v402, %v418
  %v435 = vmax.f32 %v403, %v419
  %v436 = vmax.f32 %v404, %v420
  %v437 = vmax.f32 %v405, %v421
  %v438 = vmax.f32 %v406, %v422
  %v439 = vld [vmem:[%s2] sm:$0xff]
  %v440 = vld [vmem:[%s2 + $0x8] sm:$0xff]
  %v441 = vld [vmem:[%s2 + $0x10] sm:$0xff]
  %v442 = vld [vmem:[%s2 + $0x18] sm:$0xff]
  %v443 = vld [vmem:[%s2 + $0x20] sm:$0xff]
  %v444 = vld [vmem:[%s2 + $0x28] sm:$0xff]
  %v445 = vld [vmem:[%s2 + $0x30] sm:$0xff]
  %v446 = vld [vmem:[%s2 + $0x38] sm:$0xff]
  %v447 = vld [vmem:[%s2 + $0x40] sm:$0xff]
  %v448 = vld [vmem:[%s2 + $0x48] sm:$0xff]
  %v449 = vld [vmem:[%s2 + $0x50] sm:$0xff]
  %v450 = vld [vmem:[%s2 + $0x58] sm:$0xff]
  %v451 = vld [vmem:[%s2 + $0x60] sm:$0xff]
  %v452 = vld [vmem:[%s2 + $0x68] sm:$0xff]
  %v453 = vld [vmem:[%s2 + $0x70] sm:$0xff]
  %v454 = vld [vmem:[%s2 + $0x78] sm:$0xff]
  %456 = vset.pattern.permute.xlu0 0
  %457 = vperm.xlu0 %456, %v439
  %v458 = vpop.permute.xlu0 %457
  %461 = vset.pattern.permute.xlu0 0
  %462 = vperm.xlu0 %461, %v440
  %v463 = vpop.permute.xlu0 %462
  %466 = vset.pattern.permute.xlu0 0
  %467 = vperm.xlu0 %466, %v441
  %v468 = vpop.permute.xlu0 %467
  %471 = vset.pattern.permute.xlu0 0
  %472 = vperm.xlu0 %471, %v442
  %v473 = vpop.permute.xlu0 %472
  %476 = vset.pattern.permute.xlu0 0
  %477 = vperm.xlu0 %476, %v443
  %v478 = vpop.permute.xlu0 %477
  %481 = vset.pattern.permute.xlu0 0
  %482 = vperm.xlu0 %481, %v444
  %v483 = vpop.permute.xlu0 %482
  %486 = vset.pattern.permute.xlu0 0
  %487 = vperm.xlu0 %486, %v445
  %v488 = vpop.permute.xlu0 %487
  %491 = vset.pattern.permute.xlu0 0
  %492 = vperm.xlu0 %491, %v446
  %v493 = vpop.permute.xlu0 %492
  %496 = vset.pattern.permute.xlu0 0
  %497 = vperm.xlu0 %496, %v447
  %v498 = vpop.permute.xlu0 %497
  %501 = vset.pattern.permute.xlu0 0
  %502 = vperm.xlu0 %501, %v448
  %v503 = vpop.permute.xlu0 %502
  %506 = vset.pattern.permute.xlu0 0
  %507 = vperm.xlu0 %506, %v449
  %v508 = vpop.permute.xlu0 %507
  %511 = vset.pattern.permute.xlu0 0
  %512 = vperm.xlu0 %511, %v450
  %v513 = vpop.permute.xlu0 %512
  %516 = vset.pattern.permute.xlu0 0
  %517 = vperm.xlu0 %516, %v451
  %v518 = vpop.permute.xlu0 %517
  %521 = vset.pattern.permute.xlu0 0
  %522 = vperm.xlu0 %521, %v452
  %v523 = vpop.permute.xlu0 %522
  %526 = vset.pattern.permute.xlu0 0
  %527 = vperm.xlu0 %526, %v453
  %v528 = vpop.permute.xlu0 %527
  %531 = vset.pattern.permute.xlu0 0
  %532 = vperm.xlu0 %531, %v454
  %v533 = vpop.permute.xlu0 %532
  %v535 = vadd.f32 %v423, %v458
  %v536 = vadd.f32 %v424, %v463
  %v537 = vadd.f32 %v425, %v468
  %v538 = vadd.f32 %v426, %v473
  %v539 = vadd.f32 %v427, %v478
  %v540 = vadd.f32 %v428, %v483
  %v541 = vadd.f32 %v429, %v488
  %v542 = vadd.f32 %v430, %v493
  %v543 = vadd.f32 %v431, %v498
  %v544 = vadd.f32 %v432, %v503
  %v545 = vadd.f32 %v433, %v508
  %v546 = vadd.f32 %v434, %v513
  %v547 = vadd.f32 %v435, %v518
  %v548 = vadd.f32 %v436, %v523
  %v549 = vadd.f32 %v437, %v528
  %v550 = vadd.f32 %v438, %v533
  %v551 = vmul.f32 %v535, 0.01
  %v552 = vmul.f32 %v536, 0.01
  %v553 = vmul.f32 %v537, 0.01
  %v554 = vmul.f32 %v538, 0.01
  %v555 = vmul.f32 %v539, 0.01
  %v556 = vmul.f32 %v540, 0.01
  %v557 = vmul.f32 %v541, 0.01
  %v558 = vmul.f32 %v542, 0.01
  %v559 = vmul.f32 %v543, 0.01
  %v560 = vmul.f32 %v544, 0.01
  %v561 = vmul.f32 %v545, 0.01
  %v562 = vmul.f32 %v546, 0.01
  %v563 = vmul.f32 %v547, 0.01
  %v564 = vmul.f32 %v548, 0.01
  %v565 = vmul.f32 %v549, 0.01
  %v566 = vmul.f32 %v550, 0.01
  %v567 = vmax.f32 %v535, %v551
  %v568 = vmax.f32 %v536, %v552
  %v569 = vmax.f32 %v537, %v553
  %v570 = vmax.f32 %v538, %v554
  %v571 = vmax.f32 %v539, %v555
  %v572 = vmax.f32 %v540, %v556
  %v573 = vmax.f32 %v541, %v557
  %v574 = vmax.f32 %v542, %v558
  %v575 = vmax.f32 %v543, %v559
  %v576 = vmax.f32 %v544, %v560
  %v577 = vmax.f32 %v545, %v561
  %v578 = vmax.f32 %v546, %v562
  %v579 = vmax.f32 %v547, %v563
  %v580 = vmax.f32 %v548, %v564
  %v581 = vmax.f32 %v549, %v565
  %v582 = vmax.f32 %v550, %v566
  %583 = vst [vmem:[%s3] sm:$0xff] %v567
  %s584 = smul.u32 0, 128
  %v585 = vlaneseq
  %v586 = vand.u32 %v585, 127
  %v587 = vstv %s584
  %v588 = vadd.s32 %v587, %v586
  %vm589 = vcmp.lt.s32.totalorder %v588, 128
  %v590 = vsel %vm589, 1, 0
  %v591 = vcvt.s32.f32 %v590
  %s592 = ssub.s32 128, %s584
  %p593 = scmp.lt.s32.totalorder %s592, 128
  %s594 = scalar_select %p593, %s592, 128
  %s595 = scvt.s32.f32 %s594
  %v596 = vmul.f32 %v567, %v591
  %v597 = vmul.f32 %v568, %v591
  %v598 = vmul.f32 %v569, %v591
  %v599 = vmul.f32 %v570, %v591
  %v600 = vmul.f32 %v571, %v591
  %v601 = vmul.f32 %v572, %v591
  %v602 = vmul.f32 %v573, %v591
  %v603 = vmul.f32 %v574, %v591
  %v604 = vmul.f32 %v575, %v591
  %v605 = vmul.f32 %v576, %v591
  %v606 = vmul.f32 %v577, %v591
  %v607 = vmul.f32 %v578, %v591
  %v608 = vmul.f32 %v579, %v591
  %v609 = vmul.f32 %v580, %v591
  %v610 = vmul.f32 %v581, %v591
  %v611 = vmul.f32 %v582, %v591
  %612 = vadd.xlane.f32.xlu0 %v596
  %v613 = vpop.xlane.xlu0 %612
  %614 = vadd.xlane.f32.xlu0 %v597
  %v615 = vpop.xlane.xlu0 %614
  %616 = vadd.xlane.f32.xlu0 %v598
  %v617 = vpop.xlane.xlu0 %616
  %618 = vadd.xlane.f32.xlu0 %v599
  %v619 = vpop.xlane.xlu0 %618
  %620 = vadd.xlane.f32.xlu0 %v600
  %v621 = vpop.xlane.xlu0 %620
  %622 = vadd.xlane.f32.xlu0 %v601
  %v623 = vpop.xlane.xlu0 %622
  %624 = vadd.xlane.f32.xlu0 %v602
  %v625 = vpop.xlane.xlu0 %624
  %626 = vadd.xlane.f32.xlu0 %v603
  %v627 = vpop.xlane.xlu0 %626
  %628 = vadd.xlane.f32.xlu0 %v604
  %v629 = vpop.xlane.xlu0 %628
  %630 = vadd.xlane.f32.xlu0 %v605
  %v631 = vpop.xlane.xlu0 %630
  %632 = vadd.xlane.f32.xlu0 %v606
  %v633 = vpop.xlane.xlu0 %632
  %634 = vadd.xlane.f32.xlu0 %v607
  %v635 = vpop.xlane.xlu0 %634
  %636 = vadd.xlane.f32.xlu0 %v608
  %v637 = vpop.xlane.xlu0 %636
  %638 = vadd.xlane.f32.xlu0 %v609
  %v639 = vpop.xlane.xlu0 %638
  %640 = vadd.xlane.f32.xlu0 %v610
  %v641 = vpop.xlane.xlu0 %640
  %642 = vadd.xlane.f32.xlu0 %v611
  %v643 = vpop.xlane.xlu0 %642
  %v644 = vstv %s595
  %v645 = vrcp.pop %v644
  %v646 = vmul.f32 %v644, %v645
  %v647 = vsub.f32 1.0, %v646
  %v648 = vmul.f32 %v645, %v647
  %v649 = vadd.f32 %v645, %v648
  %vm650 = vweird.f32 %v644
  %vm651 = vweird.f32 %v645
  %vm652 = vmor %vm650, %vm651
  %v653 = vsel %vm652, %v645, %v649
  %v654 = vand.u32 2147483647, %v644
  %vm655 = vcmp.eq.f32.partialorder %v654, 8.507059e+37
  %v656 = vand.u32 %v644, 2147483648
  %v657 = vor.u32 1.1754944e-38, %v656
  %v658 = vsel %vm655, %v657, %v653
  %v659 = vmul.f32 %v613, %v658
  %v660 = vmul.f32 %v615, %v658
  %v661 = vmul.f32 %v617, %v658
  %v662 = vmul.f32 %v619, %v658
  %v663 = vmul.f32 %v621, %v658
  %v664 = vmul.f32 %v623, %v658
  %v665 = vmul.f32 %v625, %v658
  %v666 = vmul.f32 %v627, %v658
  %v667 = vmul.f32 %v629, %v658
  %v668 = vmul.f32 %v631, %v658
  %v669 = vmul.f32 %v633, %v658
  %v670 = vmul.f32 %v635, %v658
  %v671 = vmul.f32 %v637, %v658
  %v672 = vmul.f32 %v639, %v658
  %v673 = vmul.f32 %v641, %v658
  %v674 = vmul.f32 %v643, %v658
  %v675 = vsub.f32 %v567, %v659
  %v676 = vsub.f32 %v568, %v660
  %v677 = vsub.f32 %v569, %v661
  %v678 = vsub.f32 %v570, %v662
  %v679 = vsub.f32 %v571, %v663
  %v680 = vsub.f32 %v572, %v664
  %v681 = vsub.f32 %v573, %v665
  %v682 = vsub.f32 %v574, %v666
  %v683 = vsub.f32 %v575, %v667
  %v684 = vsub.f32 %v576, %v668
  %v685 = vsub.f32 %v577, %v669
  %v686 = vsub.f32 %v578, %v670
  %v687 = vsub.f32 %v579, %v671
  %v688 = vsub.f32 %v580, %v672
  %v689 = vsub.f32 %v581, %v673
  %v690 = vsub.f32 %v582, %v674
  %v691 = vmul.f32 %v675, %v591
  %v692 = vmul.f32 %v676, %v591
  %v693 = vmul.f32 %v677, %v591
  %v694 = vmul.f32 %v678, %v591
  %v695 = vmul.f32 %v679, %v591
  %v696 = vmul.f32 %v680, %v591
  %v697 = vmul.f32 %v681, %v591
  %v698 = vmul.f32 %v682, %v591
  %v699 = vmul.f32 %v683, %v591
  %v700 = vmul.f32 %v684, %v591
  %v701 = vmul.f32 %v685, %v591
  %v702 = vmul.f32 %v686, %v591
  %v703 = vmul.f32 %v687, %v591
  %v704 = vmul.f32 %v688, %v591
  %v705 = vmul.f32 %v689, %v591
  %v706 = vmul.f32 %v690, %v591
  %v707 = vmul.f32 %v691, %v691
  %v708 = vmul.f32 %v692, %v692
  %v709 = vmul.f32 %v693, %v693
  %v710 = vmul.f32 %v694, %v694
  %v711 = vmul.f32 %v695, %v695
  %v712 = vmul.f32 %v696, %v696
  %v713 = vmul.f32 %v697, %v697
  %v714 = vmul.f32 %v698, %v698
  %v715 = vmul.f32 %v699, %v699
  %v716 = vmul.f32 %v700, %v700
  %v717 = vmul.f32 %v701, %v701
  %v718 = vmul.f32 %v702, %v702
  %v719 = vmul.f32 %v703, %v703
  %v720 = vmul.f32 %v704, %v704
  %v721 = vmul.f32 %v705, %v705
  %v722 = vmul.f32 %v706, %v706
  %723 = vadd.xlane.f32.xlu0 %v707
  %v724 = vpop.xlane.xlu0 %723
  %725 = vadd.xlane.f32.xlu0 %v708
  %v726 = vpop.xlane.xlu0 %725
  %727 = vadd.xlane.f32.xlu0 %v709
  %v728 = vpop.xlane.xlu0 %727
  %729 = vadd.xlane.f32.xlu0 %v710
  %v730 = vpop.xlane.xlu0 %729
  %731 = vadd.xlane.f32.xlu0 %v711
  %v732 = vpop.xlane.xlu0 %731
  %733 = vadd.xlane.f32.xlu0 %v712
  %v734 = vpop.xlane.xlu0 %733
  %735 = vadd.xlane.f32.xlu0 %v713
  %v736 = vpop.xlane.xlu0 %735
  %737 = vadd.xlane.f32.xlu0 %v714
  %v738 = vpop.xlane.xlu0 %737
  %739 = vadd.xlane.f32.xlu0 %v715
  %v740 = vpop.xlane.xlu0 %739
  %741 = vadd.xlane.f32.xlu0 %v716
  %v742 = vpop.xlane.xlu0 %741
  %743 = vadd.xlane.f32.xlu0 %v717
  %v744 = vpop.xlane.xlu0 %743
  %745 = vadd.xlane.f32.xlu0 %v718
  %v746 = vpop.xlane.xlu0 %745
  %747 = vadd.xlane.f32.xlu0 %v719
  %v748 = vpop.xlane.xlu0 %747
  %749 = vadd.xlane.f32.xlu0 %v720
  %v750 = vpop.xlane.xlu0 %749
  %751 = vadd.xlane.f32.xlu0 %v721
  %v752 = vpop.xlane.xlu0 %751
  %753 = vadd.xlane.f32.xlu0 %v722
  %v754 = vpop.xlane.xlu0 %753
  %vm755 = vcmask 7168
  %756 = vst.msk [vmem:[%s4] sm:$0xff] %vm755, %v613
  %757 = vst.msk [vmem:[%s4 + $0x8] sm:$0xff] %vm755, %v615
  %758 = vst.msk [vmem:[%s4 + $0x10] sm:$0xff] %vm755, %v617
  %759 = vst.msk [vmem:[%s4 + $0x18] sm:$0xff] %vm755, %v619
  %760 = vst.msk [vmem:[%s4 + $0x20] sm:$0xff] %vm755, %v621
  %761 = vst.msk [vmem:[%s4 + $0x28] sm:$0xff] %vm755, %v623
  %762 = vst.msk [vmem:[%s4 + $0x30] sm:$0xff] %vm755, %v625
  %763 = vst.msk [vmem:[%s4 + $0x38] sm:$0xff] %vm755, %v627
  %764 = vst.msk [vmem:[%s4 + $0x40] sm:$0xff] %vm755, %v629
  %765 = vst.msk [vmem:[%s4 + $0x48] sm:$0xff] %vm755, %v631
  %766 = vst.msk [vmem:[%s4 + $0x50] sm:$0xff] %vm755, %v633
  %767 = vst.msk [vmem:[%s4 + $0x58] sm:$0xff] %vm755, %v635
  %768 = vst.msk [vmem:[%s4 + $0x60] sm:$0xff] %vm755, %v637
  %769 = vst.msk [vmem:[%s4 + $0x68] sm:$0xff] %vm755, %v639
  %770 = vst.msk [vmem:[%s4 + $0x70] sm:$0xff] %vm755, %v641
  %771 = vst.msk [vmem:[%s4 + $0x78] sm:$0xff] %vm755, %v643
  %772 = vst.msk [vmem:[%s5] sm:$0xff] %vm755, %v724
  %773 = vst.msk [vmem:[%s5 + $0x8] sm:$0xff] %vm755, %v726
  %774 = vst.msk [vmem:[%s5 + $0x10] sm:$0xff] %vm755, %v728
  %775 = vst.msk [vmem:[%s5 + $0x18] sm:$0xff] %vm755, %v730
  %776 = vst.msk [vmem:[%s5 + $0x20] sm:$0xff] %vm755, %v732
  %777 = vst.msk [vmem:[%s5 + $0x28] sm:$0xff] %vm755, %v734
  %778 = vst.msk [vmem:[%s5 + $0x30] sm:$0xff] %vm755, %v736
  %779 = vst.msk [vmem:[%s5 + $0x38] sm:$0xff] %vm755, %v738
  %780 = vst.msk [vmem:[%s5 + $0x40] sm:$0xff] %vm755, %v740
  %781 = vst.msk [vmem:[%s5 + $0x48] sm:$0xff] %vm755, %v742
  %782 = vst.msk [vmem:[%s5 + $0x50] sm:$0xff] %vm755, %v744
  %783 = vst.msk [vmem:[%s5 + $0x58] sm:$0xff] %vm755, %v746
  %784 = vst.msk [vmem:[%s5 + $0x60] sm:$0xff] %vm755, %v748
  %785 = vst.msk [vmem:[%s5 + $0x68] sm:$0xff] %vm755, %v750
  %786 = vst.msk [vmem:[%s5 + $0x70] sm:$0xff] %vm755, %v752
  %787 = vst.msk [vmem:[%s5 + $0x78] sm:$0xff] %vm755, %v754
  // Predicated region
  $region14: #{convnet_forward.1} parent=0 // pred_check
    _
  $region15: #{convnet_forward.1} parent=0 // pred_check_branch
    %789 = sbr.rel (0) target = $region17
  $region16: #{convnet_forward.1} parent=0 // pred_region
    _
  $region17: #{convnet_forward.1} parent=0 // pred_fallthru
    _
  // Predicated region
  $region18: #{convnet_forward.1} parent=0 // pred_check
    _
  $region19: #{convnet_forward.1} parent=0 // pred_check_branch
    %791 = sbr.rel (0) target = $region21
  $region20: #{convnet_forward.1} parent=0 // pred_region
    _
  $region21: #{convnet_forward.1} parent=0 // pred_fallthru
    _
  // Predicated region
  $region22: #{convnet_forward.1} parent=0 // pred_check
    _
  $region23: #{convnet_forward.1} parent=0 // pred_check_branch
    %793 = sbr.rel (0) target = $region25
  $region24: #{convnet_forward.1} parent=0 // pred_region
    _
  $region25: #{convnet_forward.1} parent=0 // pred_fallthru
    _
  // Predicated region
  $region26: #{convnet_forward.1} parent=0 // pred_check
    _
  $region27: #{convnet_forward.1} parent=0 // pred_check_branch
    %795 = sbr.rel (0) target = $region29
  $region28: #{convnet_forward.1} parent=0 // pred_region
    _
  $region29: #{convnet_forward.1} parent=0 // pred_fallthru
    _
  // Predicated region
  $region30: #{convnet_forward.1} parent=0 // pred_check
    _
  $region31: #{convnet_forward.1} parent=0 // pred_check_branch
    %797 = sbr.rel (0) target = $region33
  $region32: #{convnet_forward.1} parent=0 // pred_region
    _
  $region33: #{convnet_forward.1} parent=0 // pred_fallthru
    _
  // Predicated region
  $region34: #{convnet_forward.1} parent=0 // pred_check
    _
  $region35: #{convnet_forward.1} parent=0 // pred_check_branch
    %799 = sbr.rel (0) target = $region37
  $region36: #{convnet_forward.1} parent=0 // pred_region
    _
  $region37: #{convnet_forward.1} parent=0 // pred_fallthru
    _

</llo_original>
